<compile_context>
chip_gen: v7x
topology: tpu7x:2x2x1
jax: 0.10.0
libtpu: 0.0.40
codegen_flags: <defaults>
</compile_context>

<pallas_src>
import functools
import math

import jax
import jax.numpy as jnp
from jax.experimental import pallas as pl
from jax.experimental.pallas import tpu as pltpu

EPS = 1e-5  # torch.nn.LayerNorm default

# Scoped VMEM request: above the v5e (16 MiB) / v6e (32 MiB) defaults, below the
# v7x 64 MiB physical budget.  Re-tune per generation together with the tile targets.
_VMEM_LIMIT_BYTES = 48 * 1024 * 1024


# --------------------------- tiling helper ----------------------------------

def _pick_tile(dim, target, align):
    """Largest divisor of `dim` <= target that is a multiple of `align`.

    Falls back to the full dim (always layout-legal: block == full array dim)."""
    if dim <= target:
        return dim
    t = (target // align) * align
    while t >= align:
        if dim % t == 0:
            return t
        t -= align
    return dim


def _pad_lanes(n):
    """Round up to a multiple of 128 (only used when n > 128 and misaligned)."""
    return ((n + 127) // 128) * 128


# ---------------- fused LayerNorm + matmul (+bias)  --------------------------
# grid = (M//tm, N//tn); K is untiled (LN needs the full row).  The normalized
# row block is computed once per m-block (at n == 0) into a bf16 VMEM scratch
# and re-used for every n step -> no standalone LN kernel / HBM round trip.

def _ln_mm_kernel(x_ref, g_ref, bln_ref, w_ref, b_ref, o_ref, xn_ref):
    n = pl.program_id(1)

    @pl.when(n == 0)
    def _():
        x = x_ref[...].astype(jnp.float32)                     # (tm, K)
        mu = jnp.mean(x, axis=-1, keepdims=True)
        var = jnp.mean((x - mu) ** 2, axis=-1, keepdims=True)
        xn = (x - mu) * jax.lax.rsqrt(var + EPS)
        xn_ref[...] = (xn * g_ref[...] + bln_ref[...]).astype(xn_ref.dtype)

    out = jnp.dot(xn_ref[...], w_ref[...], preferred_element_type=jnp.float32)
    o_ref[...] = (out + b_ref[...]).astype(o_ref.dtype)


def ln_matmul_bias(x, gamma, beta, w, b, *, out_dtype,
                   tm_target=256, tn_target=512):
    """out = LayerNorm(x) @ w + b.  MXU in bf16, f32 accumulation."""
    M, K = x.shape
    _, N = w.shape

    # Lane-pad the output dim (e.g. vocab = 50257) so it never falls back to a
    # giant full-N weight tile.
    Np = N
    if N > 128 and N % 128 != 0:
        Np = _pad_lanes(N)
        w = jnp.pad(w, ((0, 0), (0, Np - N)))
        b = jnp.pad(b, (0, Np - N))

    tm = _pick_tile(M, tm_target, 16)      # 16: bf16 sublane packing
    tn = _pick_tile(Np, tn_target, 128)
    grid = (M // tm, Np // tn)

    out_bytes = jnp.dtype(out_dtype).itemsize
    cost = pl.CostEstimate(flops=2 * M * Np * K, transcendentals=M,
                           bytes_accessed=M * K * 2 + K * Np * 2 + M * Np * out_bytes)

    out = pl.pallas_call(
        _ln_mm_kernel,
        out_shape=jax.ShapeDtypeStruct((M, Np), out_dtype),
        grid=grid,
        in_specs=[
            pl.BlockSpec((tm, K), lambda m, n: (m, 0)),
            pl.BlockSpec((1, K), lambda m, n: (0, 0)),
            pl.BlockSpec((1, K), lambda m, n: (0, 0)),
            pl.BlockSpec((K, tn), lambda m, n: (0, n)),
            pl.BlockSpec((1, tn), lambda m, n: (0, n)),
        ],
        out_specs=pl.BlockSpec((tm, tn), lambda m, n: (m, n)),
        scratch_shapes=[pltpu.VMEM((tm, K), jnp.bfloat16)],
        compiler_params=pltpu.CompilerParams(
            dimension_semantics=("parallel", "arbitrary"),
            vmem_limit_bytes=_VMEM_LIMIT_BYTES),
        cost_estimate=cost,
    )(x.astype(jnp.bfloat16),
      gamma.reshape(1, K).astype(jnp.float32),
      beta.reshape(1, K).astype(jnp.float32),
      w.astype(jnp.bfloat16),
      b.reshape(1, Np).astype(jnp.float32))

    if Np != N:
        out = out[:, :N]
    return out


# ------------- tiled matmul + bias + residual (output projection) ------------

def _mm_res_kernel(x_ref, w_ref, b_ref, r_ref, o_ref, acc_ref):
    k = pl.program_id(2)

    @pl.when(k == 0)
    def _():
        acc_ref[...] = jnp.zeros_like(acc_ref)

    acc_ref[...] += jnp.dot(x_ref[...], w_ref[...], preferred_element_type=jnp.float32)

    @pl.when(k == pl.num_programs(2) - 1)
    def _():
        out = acc_ref[...] + b_ref[...] + r_ref[...].astype(jnp.float32)
        o_ref[...] = out.astype(o_ref.dtype)


def matmul_bias_residual(x, w, b, residual, *, out_dtype,
                         tm_target=256, tn_target=512, tk_target=512):
    """out = x @ w + b + residual (residual add fused into the epilogue)."""
    M, K = x.shape
    _, N = w.shape
    tm = _pick_tile(M, tm_target, 16)
    tn = _pick_tile(N, tn_target, 128)
    tk = _pick_tile(K, tk_target, 128)
    grid = (M // tm, N // tn, K // tk)

    out_bytes = jnp.dtype(out_dtype).itemsize
    cost = pl.CostEstimate(flops=2 * M * N * K, transcendentals=0,
                           bytes_accessed=M * K * 2 + K * N * 2 + M * N * (2 + out_bytes))

    return pl.pallas_call(
        _mm_res_kernel,
        out_shape=jax.ShapeDtypeStruct((M, N), out_dtype),
        grid=grid,
        in_specs=[
            pl.BlockSpec((tm, tk), lambda m, n, k: (m, k)),
            pl.BlockSpec((tk, tn), lambda m, n, k: (k, n)),
            pl.BlockSpec((1, tn), lambda m, n, k: (0, n)),
            pl.BlockSpec((tm, tn), lambda m, n, k: (m, n)),
        ],
        out_specs=pl.BlockSpec((tm, tn), lambda m, n, k: (m, n)),
        scratch_shapes=[pltpu.VMEM((tm, tn), jnp.float32)],
        compiler_params=pltpu.CompilerParams(
            dimension_semantics=("parallel", "parallel", "arbitrary"),
            vmem_limit_bytes=_VMEM_LIMIT_BYTES),
        cost_estimate=cost,
    )(x.astype(jnp.bfloat16), w.astype(jnp.bfloat16),
      b.reshape(1, N).astype(jnp.float32), residual.astype(jnp.bfloat16))


# --------------------------- multi-head attention ----------------------------
# grid = (B, S//tq).  The (S, 3D) fused-QKV block is DMA'd once per batch (its
# block index is constant across the q-tile axis); only the (tq, S) bias tile
# and the outputs move per step.  Heads are sliced statically in-kernel; each
# head writes its (tq, Dh) context / (tq, S) probabilities straight into the
# output refs, so only one head's working set is live at a time.

def _attn_kernel(qkv_ref, bias_ref, ctx_ref, *maybe_score,
                 num_heads, d_head, tq, scale, save_scores):
    D = num_heads * d_head
    q_start = pl.multiple_of(pl.program_id(1) * tq, tq)
    bias = bias_ref[...]                                       # (tq, S) f32 additive

    for h in range(num_heads):
        # TODO(synk): for Dh < 128 these lane slices are not 128-aligned; a
        # (B, 3, H, S, Dh) QKV layout would make them lane-dense.
        q = qkv_ref[pl.ds(q_start, tq), h * d_head:(h + 1) * d_head]          # (tq, Dh)
        k = qkv_ref[:, D + h * d_head:D + (h + 1) * d_head]                   # (S, Dh)
        v = qkv_ref[:, 2 * D + h * d_head:2 * D + (h + 1) * d_head]           # (S, Dh)

        q = q * scale                                          # bf16, (tq,Dh): cheaper than scaling (tq,S)
        # QK^T without materializing k.T (contract feature dims on the MXU).
        s = jax.lax.dot_general(q, k, (((1,), (1,)), ((), ())),
                                preferred_element_type=jnp.float32)
        s = s + bias                                           # masked_fill(-inf) analogue
        s = s - jnp.max(s, axis=-1, keepdims=True)
        p = jnp.exp(s)                                         # unnormalized probs (tq, S)
        inv_l = pl.reciprocal(jnp.sum(p, axis=-1, keepdims=True), approx=True)

        ctx = jnp.dot(p.astype(v.dtype), v, preferred_element_type=jnp.float32)
        ctx_ref[:, h * d_head:(h + 1) * d_head] = (ctx * inv_l).astype(ctx_ref.dtype)
        if save_scores:
            maybe_score[0][h] = (p * inv_l).astype(maybe_score[0].dtype)


def mha_attention(qkv, attn_bias, num_heads, save_scores, *, tq_target=256):
    """qkv: (B, S, 3D) bf16; attn_bias: (B, S, S) additive f32.

    Returns ctx (B, S, D) bf16 and, iff save_scores, probs (B, H, S, S) f32."""
    B, S, threeD = qkv.shape
    D = threeD // 3
    Dh = D // num_heads
    tq = _pick_tile(S, tq_target, 8)
    n_q = S // tq

    kernel = functools.partial(
        _attn_kernel, num_heads=num_heads, d_head=Dh, tq=tq,
        scale=1.0 / math.sqrt(Dh), save_scores=save_scores)

    in_specs = [
        pl.BlockSpec((None, S, threeD), lambda b, qi: (b, 0, 0)),
        pl.BlockSpec((None, tq, S), lambda b, qi: (b, qi, 0)),
    ]
    cparams = pltpu.CompilerParams(
        dimension_semantics=("parallel", "parallel"),
        vmem_limit_bytes=_VMEM_LIMIT_BYTES)

    if save_scores:
        ctx, scores = pl.pallas_call(
            kernel,
            out_shape=(jax.ShapeDtypeStruct((B, S, D), jnp.bfloat16),
                       jax.ShapeDtypeStruct((B, num_heads, S, S), jnp.float32)),
            grid=(B, n_q),
            in_specs=in_specs,
            out_specs=(pl.BlockSpec((None, tq, D), lambda b, qi: (b, qi, 0)),
                       pl.BlockSpec((None, num_heads, tq, S),
                                    lambda b, qi: (b, 0, qi, 0))),
            compiler_params=cparams,
        )(qkv, attn_bias)
        return ctx, scores

    ctx = pl.pallas_call(
        kernel,
        out_shape=jax.ShapeDtypeStruct((B, S, D), jnp.bfloat16),
        grid=(B, n_q),
        in_specs=in_specs,
        out_specs=pl.BlockSpec((None, tq, D), lambda b, qi: (b, qi, 0)),
        compiler_params=cparams,
    )(qkv, attn_bias)
    return ctx, None


# ---------------- fused LayerNorm + FFN + residual ---------------------------
# grid = (M//tm, F//tf).  The (tm, D) x block serves both as LN input (computed
# once per m-block into a bf16 scratch) and as the residual in the epilogue.

def _ln_ffn_kernel(x_ref, g_ref, bln_ref, w1_ref, b1_ref, w2_ref, b2_ref,
                   o_ref, xn_ref, acc_ref):
    f = pl.program_id(1)

    @pl.when(f == 0)
    def _():
        x = x_ref[...].astype(jnp.float32)
        mu = jnp.mean(x, axis=-1, keepdims=True)
        var = jnp.mean((x - mu) ** 2, axis=-1, keepdims=True)
        xn = (x - mu) * jax.lax.rsqrt(var + EPS)
        xn_ref[...] = (xn * g_ref[...] + bln_ref[...]).astype(xn_ref.dtype)
        acc_ref[...] = jnp.zeros_like(acc_ref)

    h = jnp.dot(xn_ref[...], w1_ref[...], preferred_element_type=jnp.float32) + b1_ref[...]
    h = jax.nn.gelu(h)                                         # TODO(synk): assumed GELU
    acc_ref[...] += jnp.dot(h.astype(w2_ref.dtype), w2_ref[...],
                            preferred_element_type=jnp.float32)

    @pl.when(f == pl.num_programs(1) - 1)
    def _():
        out = acc_ref[...] + b2_ref[...] + x_ref[...].astype(jnp.float32)
        o_ref[...] = out.astype(o_ref.dtype)


def ln_ffn_residual(x, gamma, beta, w1, b1, w2, b2, *, out_dtype,
                    tm_target=256, tf_target=512):
    M, D = x.shape
    _, F = w1.shape
    tm = _pick_tile(M, tm_target, 16)
    # Note (v7x): drop tf_target (e.g. 256) for very large D to stay inside 64 MiB.
    tf = _pick_tile(F, tf_target, 128)
    grid = (M // tm, F // tf)

    cost = pl.CostEstimate(flops=4 * M * F * D, transcendentals=M * F,
                           bytes_accessed=2 * M * D * 2 + 2 * D * F * 2 + M * D * 2)

    return pl.pallas_call(
        _ln_ffn_kernel,
        out_shape=jax.ShapeDtypeStruct((M, D), out_dtype),
        grid=grid,
        in_specs=[
            pl.BlockSpec((tm, D), lambda m, f: (m, 0)),
            pl.BlockSpec((1, D), lambda m, f: (0, 0)),
            pl.BlockSpec((1, D), lambda m, f: (0, 0)),
            pl.BlockSpec((D, tf), lambda m, f: (0, f)),
            pl.BlockSpec((1, tf), lambda m, f: (0, f)),
            pl.BlockSpec((tf, D), lambda m, f: (f, 0)),
            pl.BlockSpec((1, D), lambda m, f: (0, 0)),
        ],
        out_specs=pl.BlockSpec((tm, D), lambda m, f: (m, 0)),
        scratch_shapes=[pltpu.VMEM((tm, D), jnp.bfloat16),
                        pltpu.VMEM((tm, D), jnp.float32)],
        compiler_params=pltpu.CompilerParams(
            dimension_semantics=("parallel", "arbitrary"),
            vmem_limit_bytes=_VMEM_LIMIT_BYTES),
        cost_estimate=cost,
    )(x.astype(jnp.bfloat16),
      gamma.reshape(1, D).astype(jnp.float32),
      beta.reshape(1, D).astype(jnp.float32),
      w1.astype(jnp.bfloat16), b1.reshape(1, F).astype(jnp.float32),
      w2.astype(jnp.bfloat16), b2.reshape(1, D).astype(jnp.float32))


# --------------------------- Parameter init ----------------------------------

def init_params(key, vocab_size, max_len, num_blocks, d_model, d_ffn, num_heads):
    def nrm(k, shape, scale=0.02):
        return scale * jax.random.normal(k, shape, dtype=jnp.float32)

    keys = jax.random.split(key, 3 + num_blocks)
    params = {
        "num_heads": num_heads,
        "tok_emb": nrm(keys[0], (vocab_size, d_model)),
        "pos_emb": nrm(keys[1], (max_len, d_model)),
        "blocks": [],
        "lnf_g": jnp.ones((d_model,), jnp.float32),
        "lnf_b": jnp.zeros((d_model,), jnp.float32),
    }
    for i in range(num_blocks):
        bk = jax.random.split(keys[2 + i], 8)
        wq = nrm(bk[0], (d_model, d_model))
        wk = nrm(bk[1], (d_model, d_model))
        wv = nrm(bk[2], (d_model, d_model))
        params["blocks"].append({
            "ln1_g": jnp.ones((d_model,), jnp.float32),
            "ln1_b": jnp.zeros((d_model,), jnp.float32),
            "w_qkv": jnp.concatenate([wq, wk, wv], axis=1),   # fused QKV projection
            "b_qkv": jnp.zeros((3 * d_model,), jnp.float32),
            "wo": nrm(bk[3], (d_model, d_model)),
            "bo": jnp.zeros((d_model,), jnp.float32),
            "ln2_g": jnp.ones((d_model,), jnp.float32),
            "ln2_b": jnp.zeros((d_model,), jnp.float32),
            "w1": nrm(bk[4], (d_model, d_ffn)), "b1": jnp.zeros((d_ffn,), jnp.float32),
            "w2": nrm(bk[5], (d_ffn, d_model)), "b2": jnp.zeros((d_model,), jnp.float32),
        })
    params["w_out"] = nrm(keys[-1], (d_model, vocab_size))
    params["b_out"] = jnp.zeros((vocab_size,), jnp.float32)
    return params


# --------------------------- Decoder forward ---------------------------------

def decoder_forward(params, ids, self_attn_mask, save_attn_pattern=False):
    B, S = ids.shape
    D = params["tok_emb"].shape[1]
    H = params["num_heads"]

    # GPTEmbedding: token embedding (XLA gather) + learned positional embedding.
    # Dropout layers are identity (eval mode).  Residual stream kept in bf16.
    x = jnp.take(params["tok_emb"], ids, axis=0) + params["pos_emb"][:S][None, :, :]
    x = x.astype(jnp.bfloat16).reshape(B * S, D)

    # Precompute an additive attention bias once (mask==0 -> -1e30), squeeze head dim.
    if self_attn_mask is None:
        attn_bias = jnp.zeros((B, S, S), jnp.float32)
    else:
        attn_bias = jnp.where(self_attn_mask == 0.0, -1e30, 0.0)
        attn_bias = attn_bias.astype(jnp.float32).reshape(B, S, S)

    attn_patterns = []
    for blk in params["blocks"]:
        # --- self-attention sub-layer (pre-LN); LN1 fused into the QKV matmul ---
        qkv = ln_matmul_bias(x, blk["ln1_g"], blk["ln1_b"], blk["w_qkv"], blk["b_qkv"],
                             out_dtype=jnp.bfloat16).reshape(B, S, 3 * D)
        ctx, scores = mha_attention(qkv, attn_bias, H, save_attn_pattern)
        # output projection with the residual add fused into the epilogue
        x = matmul_bias_residual(ctx.reshape(B * S, D), blk["wo"], blk["bo"],
                                 residual=x, out_dtype=jnp.bfloat16)

        # --- FFN sub-layer (pre-LN); LN2 + residual fused into the FFN kernel ---
        x = ln_ffn_residual(x, blk["ln2_g"], blk["ln2_b"],
                            blk["w1"], blk["b1"], blk["w2"], blk["b2"],
                            out_dtype=jnp.bfloat16)

        if save_attn_pattern:
            attn_patterns.append(scores[0])        # matches attn_pattern[0].unsqueeze(0)

    # Final LayerNorm fused into the vocab projection (lane-padded if needed).
    logits = ln_matmul_bias(x, params["lnf_g"], params["lnf_b"],
                            params["w_out"], params["b_out"],
                            out_dtype=jnp.float32).reshape(B, S, -1)

    if save_attn_pattern:
        patterns = jnp.stack(attn_patterns, axis=0)
    else:
        patterns = jnp.zeros((0,), jnp.float32)    # empty tensor, like torch.tensor([])
    return logits, patterns


# --------------------------------- main ---------------------------------------

if __name__ == "__main__":
    vocab_size, max_len = 64, 16
    num_blocks, d_model, d_ffn, num_heads, p_dropout = 2, 32, 64, 4, 0.1
    B, S = 2, 8

    root = jax.random.PRNGKey(0)
    k_param, k_ids = jax.random.split(root)
    params = init_params(k_param, vocab_size, max_len, num_blocks, d_model, d_ffn, num_heads)

    ids = jax.random.randint(k_ids, (B, S), 0, vocab_size, dtype=jnp.int32)
    causal = jnp.tril(jnp.ones((S, S), jnp.float32))
    self_attn_mask = jnp.broadcast_to(causal[None, None, :, :], (B, 1, S, S))

    # Path with attention-pattern output.
    logits, attn_patterns = decoder_forward(params, ids, self_attn_mask,
                                            save_attn_pattern=True)
    jax.block_until_ready(logits)
    jax.block_until_ready(attn_patterns)

    assert logits.shape == (B, S, vocab_size)
    assert attn_patterns.shape == (num_blocks, num_heads, S, S)
    assert bool(jnp.all(jnp.isfinite(logits)))
    # attention rows are probability distributions (bf16 MXU + approx reciprocal -> loose tol)
    assert bool(jnp.allclose(jnp.sum(attn_patterns, axis=-1), 1.0, atol=2e-2))

    # Fast path: no score materialization -> identical logits.
    logits2, empty = decoder_forward(params, ids, self_attn_mask, save_attn_pattern=False)
    jax.block_until_ready(logits2)
    assert empty.shape == (0,)
    assert bool(jnp.allclose(logits, logits2, atol=1e-5, rtol=1e-5))

    print("KERNEL_OK")
</pallas_src>

<mosaic_0001>
module attributes {stable_mosaic.version = 11 : i64} {
  func.func @_ln_mm_kernel(%arg0: i32, %arg1: i32, %arg2: memref<16x32xbf16, #tpu.memory_space<vmem>>, %arg3: memref<1x32xf32, #tpu.memory_space<vmem>>, %arg4: memref<1x32xf32, #tpu.memory_space<vmem>>, %arg5: memref<32x96xbf16, #tpu.memory_space<vmem>>, %arg6: memref<1x96xf32, #tpu.memory_space<vmem>>, %arg7: memref<16x96xbf16, #tpu.memory_space<vmem>>, %arg8: memref<16x32xbf16, #tpu.memory_space<vmem>>) attributes {dimension_semantics = [#tpu.dimension_semantics<parallel>, #tpu.dimension_semantics<arbitrary>], iteration_bounds = array<i64: 1, 1>, scalar_prefetch = 0 : i64, scratch_operands = 1 : i64, tpu.core_type = #tpu.core_type<tc>, window_params = [{transform_indices = @transform_0, window_bounds = array<i64: 16, 32>}, {pipeline_mode = #tpu.pipeline_mode<synchronous>, transform_indices = @transform_1, window_bounds = array<i64: 1, 32>}, {pipeline_mode = #tpu.pipeline_mode<synchronous>, transform_indices = @transform_2, window_bounds = array<i64: 1, 32>}, {transform_indices = @transform_3, window_bounds = array<i64: 32, 96>}, {transform_indices = @transform_4, window_bounds = array<i64: 1, 96>}, {transform_indices = @transform_5, window_bounds = array<i64: 16, 96>}]} {
    %c0_i32 = arith.constant 0 : i32
    %0 = arith.cmpi eq, %arg1, %c0_i32 : i32
    %1 = arith.extui %0 : i1 to i32
    %c0_i32_0 = arith.constant 0 : i32
    %2 = arith.cmpi ne, %1, %c0_i32_0 : i32
    scf.if %2 {
      %c0_8 = arith.constant 0 : index
      %c0_9 = arith.constant 0 : index
      %11 = vector.load %arg2[%c0_8, %c0_9] : memref<16x32xbf16, #tpu.memory_space<vmem>>, vector<16x32xbf16>
      %12 = arith.extf %11 : vector<16x32xbf16> to vector<16x32xf32>
      %cst_10 = arith.constant dense<0.000000e+00> : vector<16xf32>
      %13 = vector.multi_reduction <add>, %12, %cst_10 [1] : vector<16x32xf32> to vector<16xf32>
      %14 = vector.shape_cast %13 : vector<16xf32> to vector<16x1xf32>
      %cst_11 = arith.constant 3.200000e+01 : f32
      %15 = vector.broadcast %cst_11 : f32 to vector<16x1xf32>
      %16 = arith.divf %14, %15 : vector<16x1xf32>
      %17 = vector.broadcast %16 : vector<16x1xf32> to vector<16x32xf32>
      %18 = arith.subf %12, %17 : vector<16x32xf32>
      %19 = arith.mulf %18, %18 : vector<16x32xf32>
      %cst_12 = arith.constant dense<0.000000e+00> : vector<16xf32>
      %20 = vector.multi_reduction <add>, %19, %cst_12 [1] : vector<16x32xf32> to vector<16xf32>
      %21 = vector.shape_cast %20 : vector<16xf32> to vector<16x1xf32>
      %cst_13 = arith.constant 3.200000e+01 : f32
      %22 = vector.broadcast %cst_13 : f32 to vector<16x1xf32>
      %23 = arith.divf %21, %22 : vector<16x1xf32>
      %24 = vector.broadcast %16 : vector<16x1xf32> to vector<16x32xf32>
      %25 = arith.subf %12, %24 : vector<16x32xf32>
      %cst_14 = arith.constant 9.99999974E-6 : f32
      %26 = vector.broadcast %cst_14 : f32 to vector<16x1xf32>
      %27 = arith.addf %23, %26 : vector<16x1xf32>
      %28 = math.rsqrt %27 : vector<16x1xf32>
      %29 = vector.broadcast %28 : vector<16x1xf32> to vector<16x32xf32>
      %30 = arith.mulf %25, %29 : vector<16x32xf32>
      %c0_15 = arith.constant 0 : index
      %c0_16 = arith.constant 0 : index
      %31 = vector.load %arg3[%c0_15, %c0_16] : memref<1x32xf32, #tpu.memory_space<vmem>>, vector<1x32xf32>
      %32 = vector.broadcast %31 : vector<1x32xf32> to vector<16x32xf32>
      %33 = arith.mulf %30, %32 : vector<16x32xf32>
      %c0_17 = arith.constant 0 : index
      %c0_18 = arith.constant 0 : index
      %34 = vector.load %arg4[%c0_17, %c0_18] : memref<1x32xf32, #tpu.memory_space<vmem>>, vector<1x32xf32>
      %35 = vector.broadcast %34 : vector<1x32xf32> to vector<16x32xf32>
      %36 = arith.addf %33, %35 : vector<16x32xf32>
      %37 = arith.truncf %36 : vector<16x32xf32> to vector<16x32xbf16>
      %c0_19 = arith.constant 0 : index
      %c0_20 = arith.constant 0 : index
      %38 = vector.load %arg8[%c0_19, %c0_20] : memref<16x32xbf16, #tpu.memory_space<vmem>>, vector<16x32xbf16>
      tpu.vector_store %arg8[%c0_19, %c0_20], %37 {strides = array<i32>} : memref<16x32xbf16, #tpu.memory_space<vmem>>, vector<16x32xbf16>,
    } else {
    }
    %c0 = arith.constant 0 : index
    %c0_1 = arith.constant 0 : index
    %3 = vector.load %arg8[%c0, %c0_1] : memref<16x32xbf16, #tpu.memory_space<vmem>>, vector<16x32xbf16>
    %c0_2 = arith.constant 0 : index
    %c0_3 = arith.constant 0 : index
    %4 = vector.load %arg5[%c0_2, %c0_3] : memref<32x96xbf16, #tpu.memory_space<vmem>>, vector<32x96xbf16>
    %cst = arith.constant dense<0.000000e+00> : vector<16x96xf32>
    %5 = tpu.matmul %3, %4, %cst {dimension_numbers = #tpu.dot_dimension_numbers<[1], [0], [0], [1], [0, 0, 1, 1], [], []>} : vector<16x32xbf16>, vector<32x96xbf16>, vector<16x96xf32> -> vector<16x96xf32>
    %c0_4 = arith.constant 0 : index
    %c0_5 = arith.constant 0 : index
    %6 = vector.load %arg6[%c0_4, %c0_5] : memref<1x96xf32, #tpu.memory_space<vmem>>, vector<1x96xf32>
    %7 = vector.broadcast %6 : vector<1x96xf32> to vector<16x96xf32>
    %8 = arith.addf %5, %7 : vector<16x96xf32>
    %9 = arith.truncf %8 : vector<16x96xf32> to vector<16x96xbf16>
    %c0_6 = arith.constant 0 : index
    %c0_7 = arith.constant 0 : index
    %10 = vector.load %arg7[%c0_6, %c0_7] : memref<16x96xbf16, #tpu.memory_space<vmem>>, vector<16x96xbf16>
    tpu.vector_store %arg7[%c0_6, %c0_7], %9 {strides = array<i32>} : memref<16x96xbf16, #tpu.memory_space<vmem>>, vector<16x96xbf16>,
    return
  }
  func.func @transform_0(%arg0: i32, %arg1: i32) -> (i32, i32) {
    %c0_i32 = arith.constant 0 : i32
    %c0_i32_0 = arith.constant 0 : i32
    return %arg0, %c0_i32 : i32, i32
  }
  func.func @transform_1(%arg0: i32, %arg1: i32) -> (i32, i32) {
    %c0_i32 = arith.constant 0 : i32
    %c0_i32_0 = arith.constant 0 : i32
    %c0_i32_1 = arith.constant 0 : i32
    return %c0_i32, %c0_i32_0 : i32, i32
  }
  func.func @transform_2(%arg0: i32, %arg1: i32) -> (i32, i32) {
    %c0_i32 = arith.constant 0 : i32
    %c0_i32_0 = arith.constant 0 : i32
    %c0_i32_1 = arith.constant 0 : i32
    return %c0_i32, %c0_i32_0 : i32, i32
  }
  func.func @transform_3(%arg0: i32, %arg1: i32) -> (i32, i32) {
    %c0_i32 = arith.constant 0 : i32
    %c0_i32_0 = arith.constant 0 : i32
    return %c0_i32, %arg1 : i32, i32
  }
  func.func @transform_4(%arg0: i32, %arg1: i32) -> (i32, i32) {
    %c0_i32 = arith.constant 0 : i32
    %c0_i32_0 = arith.constant 0 : i32
    return %c0_i32, %arg1 : i32, i32
  }
  func.func @transform_5(%arg0: i32, %arg1: i32) -> (i32, i32) {
    %c0_i32 = arith.constant 0 : i32
    return %arg0, %arg1 : i32, i32
  }
}

</mosaic_0001>

<llo_original>
// kernel: tpu_custom_call.1
$region0: #{tpu_custom_call.1}
  #allocation0 [shape = 'u32[]', space=smem, size = 0x4, offset = 0x4, fixed_abs, tag = 'smem constant byte address 0x4 - core index']
  #allocation1 [shape = 'u32[144,128]{1,0:T(1,128)}', space=vmem, size = 0x12000, scoped, tag = 'internal scratch']
  #allocation2 [shape = 'bf16[16,32]{1,0:T(16,128)(2,1)}', space=vmem, size = 0x1000, scoped, tag = 'scratch operand']
  %s0 = inlined_call_operand.hbm [shape: bf16[16,32], index: 0, kind: input, shape index: {}]
  %s1 = inlined_call_operand.vmem [shape: f32[1,32], index: 1, kind: input, shape index: {}]
  %s2 = inlined_call_operand.vmem [shape: f32[1,32], index: 2, kind: input, shape index: {}]
  %s3 = inlined_call_operand.hbm [shape: bf16[32,96], index: 3, kind: input, shape index: {}]
  %s4 = inlined_call_operand.vmem [shape: f32[1,96], index: 4, kind: input, shape index: {}]
  %s5 = inlined_call_operand.hbm [shape: bf16[16,96], index: 5, kind: output, shape index: {}]
  %s6 = sld [smem:[#allocation0]]
  $region42: #{tpu_custom_call.1} parent=0
    _
  %s8 = ssub.s32 1, %s6
  %s9 = scalar_select 0, %s8, %s6
  $region1: #{tpu_custom_call.1} parent=0
    #allocation3 [shape = 'u8[4096]{0}', space=vmem, size = 0x1000, scoped, tag = 'input window, operand 0, single buffered']
    #allocation4 [shape = 's32[1]{0}', space=sflag, size = 0x4, scoped, tag = 'scoped memory for tpu_custom_call.1']
    #allocation5 [shape = 's32[1]{0}', space=sflag, size = 0x4, scoped, tag = 'scoped memory for tpu_custom_call.1']
    #allocation6 [shape = 'u8[8192]{0}', space=vmem, size = 0x2000, scoped, tag = 'input window, operand 3, single buffered']
    #allocation7 [shape = 's32[1]{0}', space=sflag, size = 0x4, scoped, tag = 'scoped memory for tpu_custom_call.1']
    #allocation8 [shape = 'u8[4096]{0}', space=vmem, size = 0x1000, scoped, tag = 'output window, operand 0, single buffered']
    %10 = vsyncpa [#allocation4], 0
    %11 = vsyncpa [#allocation7], 0
    %12 = vsyncpa [#allocation5], 0
    // Predicated region
    $region2: #{tpu_custom_call.1} parent=1 // pred_check
      _
    $region3: #{tpu_custom_call.1} parent=1 // pred_check_branch
      %14 = sbr.rel (0) target = $region5
    $region4: #{tpu_custom_call.1} parent=1 // pred_region
      %s16 = ssub.s32 128, 128
      %17 = vsyncadd [#allocation4], %s16
      %s18 = sshll.u32 [#allocation3], 4
      %s19 = int_to_ptr.vmem [resolvable:$true] %s18
      %24 = dma.hbm_to_vmem [thread:$0]  %s0, 128, %s19, [#allocation4], 64, 64, 4
    $region5: #{tpu_custom_call.1} parent=1 // pred_fallthru
      _
    // Predicated region
    $region6: #{tpu_custom_call.1} parent=1 // pred_check
      _
    $region7: #{tpu_custom_call.1} parent=1 // pred_check_branch
      %26 = sbr.rel (0) target = $region9
    $region8: #{tpu_custom_call.1} parent=1 // pred_region
      _
    $region9: #{tpu_custom_call.1} parent=1 // pred_fallthru
      _
    // Predicated region
    $region10: #{tpu_custom_call.1} parent=1 // pred_check
      _
    $region11: #{tpu_custom_call.1} parent=1 // pred_check_branch
      %28 = sbr.rel (0) target = $region13
    $region12: #{tpu_custom_call.1} parent=1 // pred_region
      _
    $region13: #{tpu_custom_call.1} parent=1 // pred_fallthru
      _
    // Predicated region
    $region14: #{tpu_custom_call.1} parent=1 // pred_check
      _
    $region15: #{tpu_custom_call.1} parent=1 // pred_check_branch
      %30 = sbr.rel (0) target = $region17
    $region16: #{tpu_custom_call.1} parent=1 // pred_region
      %s32 = ssub.s32 256, 256
      %33 = vsyncadd [#allocation7], %s32
      %s34 = sshll.u32 [#allocation6], 4
      %s35 = int_to_ptr.vmem [resolvable:$true] %s34
      %40 = dma.hbm_to_vmem [thread:$0]  %s3, 256, %s35, [#allocation7], 64, 64, 4
    $region17: #{tpu_custom_call.1} parent=1 // pred_fallthru
      _
    // Predicated region
    $region18: #{tpu_custom_call.1} parent=1 // pred_check
      _
    $region19: #{tpu_custom_call.1} parent=1 // pred_check_branch
      %42 = sbr.rel (0) target = $region21
    $region20: #{tpu_custom_call.1} parent=1 // pred_region
      _
    $region21: #{tpu_custom_call.1} parent=1 // pred_fallthru
      _
    // Predicated region
    $region22: #{tpu_custom_call.1} parent=1 // pred_check
      _
    $region23: #{tpu_custom_call.1} parent=1 // pred_check_branch
      %44 = sbr.rel (0) target = $region25
    $region24: #{tpu_custom_call.1} parent=1 // pred_region
      %45 = dma.done [#allocation4], 128
    $region25: #{tpu_custom_call.1} parent=1 // pred_fallthru
      _
    // Predicated region
    $region26: #{tpu_custom_call.1} parent=1 // pred_check
      _
    $region27: #{tpu_custom_call.1} parent=1 // pred_check_branch
      %47 = sbr.rel (0) target = $region29
    $region28: #{tpu_custom_call.1} parent=1 // pred_region
      %48 = dma.done [#allocation7], 256
    $region29: #{tpu_custom_call.1} parent=1 // pred_fallthru
      _
    %p50 = scmp.eq.s32.totalorder 0, 0
    // Predicated region
    $region30: #{tpu_custom_call.1} parent=1 // pred_check
      %p51 = pneg %p50
    $region31: #{tpu_custom_call.1} parent=1 // pred_check_branch
      %53 = sbr.rel (%p51) target = $region33
    $region32: #{tpu_custom_call.1} parent=1 // pred_region
      %v54 = vld [vmem:[#allocation3] sm:$0xf]
      %v55 = vld [vmem:[#allocation3 + $0x4] sm:$0xf]
      %v56 = vunpack.c.l.bf16 %v54
      %v57 = vunpack.c.l.bf16 %v55
      %vm58 = vcmask 261120
      %v59 = vsel %vm58, %v56, 0.0
      %60 = vadd.xlane.f32.xlu0 %v59
      %v61 = vpop.xlane.xlu0 %60
      %v62 = vsel %vm58, %v57, 0.0
      %63 = vadd.xlane.f32.xlu0 %v62
      %v64 = vpop.xlane.xlu0 %63
      %v65 = vrcp.pop 32.0
      %v66 = vmul.f32 %v61, %v65
      %v67 = vmul.f32 %v64, %v65
      %v68 = vsub.f32 %v56, %v66
      %v69 = vsub.f32 %v57, %v67
      %v70 = vmul.f32 %v68, %v68
      %v71 = vmul.f32 %v69, %v69
      %v72 = vsel %vm58, %v70, 0.0
      %73 = vadd.xlane.f32.xlu0 %v72
      %v74 = vpop.xlane.xlu0 %73
      %v75 = vsel %vm58, %v71, 0.0
      %76 = vadd.xlane.f32.xlu0 %v75
      %v77 = vpop.xlane.xlu0 %76
      %v78 = vmul.f32 %v74, %v65
      %v79 = vmul.f32 %v77, %v65
      %v80 = vadd.f32 %v78, 1e-05
      %v81 = vadd.f32 %v79, 1e-05
      %v82 = vrsqrt.pop %v80
      %v83 = vrsqrt.pop %v81
      %v84 = vmul.f32 %v68, %v82
      %v85 = vmul.f32 %v69, %v83
      %v86 = vld [vmem:[%s1] sm:$0x1]
      %v88 = vlaneseq
      %v89 = vshrl.u32 %v88, 7
      %v90 = vsub.s32 0, %v89
      %v91 = vrot.slane %v86, %v90
      %v93 = vmul.f32 %v84, %v91
      %v94 = vmul.f32 %v85, %v91
      %v95 = vld [vmem:[%s2] sm:$0x1]
      %v97 = vlaneseq
      %v98 = vshrl.u32 %v97, 7
      %v99 = vsub.s32 0, %v98
      %v100 = vrot.slane %v95, %v99
      %v102 = vadd.f32 %v93, %v100
      %v103 = vadd.f32 %v94, %v100
      %v104 = vpack.c.bf16 %v103, %v102
      %105 = vst.msk [vmem:[#allocation2] sm:$0xff] %vm58, %v104
    $region33: #{tpu_custom_call.1} parent=1 // pred_fallthru
      _
    %v106 = vld [vmem:[#allocation2] sm:$0xff]
    %v107 = vld [vmem:[#allocation6] sm:$0xf]
    %v108 = vld [vmem:[#allocation6 + $0x4] sm:$0xf]
    %v109 = vld [vmem:[#allocation6 + $0x8] sm:$0xf]
    %v110 = vld [vmem:[#allocation6 + $0xc] sm:$0xf]
    %v111 = vld [vmem:[%s4] sm:$0x1]
    %v113 = vlaneseq
    %v114 = vshrl.u32 %v113, 7
    %v115 = vsub.s32 0, %v114
    %v116 = vrot.slane %v111, %v115
    %v122 = vunpack.c.l.b16 %v107
    %v123 = vunpack.c.l.b16 %v108
    %v124 = vunpack.c.l.b16 %v109
    %v125 = vunpack.c.l.b16 %v110
    %v126 = vpack.c.b16 %v123, %v122
    %v127 = vpack.c.b16 %v125, %v124
    %vm130 = vcmask 261120
    %v132 = vsel %vm130, %v106, 0
    %134 = vmatprep.subr.bf16.mxu0 0
    %135 = vmatpush1.bf16.msra.mxu0 %v126
    %136 = vmatprep.subr.bf16.mxu0 0
    %137 = vmatpush1.bf16.msra.mxu0 %v127
    %138 = vmatprep.subr.bf16.mxu0 0
    %139 = vmatpush1.bf16.msra.mxu0 0
    %140 = vmatprep.subr.bf16.mxu0 0
    %141 = vmatpush1.bf16.msra.mxu0 0
    %142 = vmatprep.subr.bf16.mxu0 0
    %143 = vmatpush1.bf16.msra.mxu0 0
    %144 = vmatprep.subr.bf16.mxu0 0
    %145 = vmatpush1.bf16.msra.mxu0 0
    %146 = vmatprep.subr.bf16.mxu0 0
    %147 = vmatpush1.bf16.msra.mxu0 0
    %148 = vmatprep.subr.bf16.mxu0 0
    %149 = vmatpush1.bf16.msra.mxu0 0
    %150 = vmatprep.subr.bf16.mxu0 0
    %151 = vmatpush1.bf16.msra.mxu0 0
    %152 = vmatprep.subr.bf16.mxu0 0
    %153 = vmatpush1.bf16.msra.mxu0 0
    %154 = vmatprep.subr.bf16.mxu0 0
    %155 = vmatpush1.bf16.msra.mxu0 0
    %156 = vmatprep.subr.bf16.mxu0 0
    %157 = vmatpush1.bf16.msra.mxu0 0
    %158 = vmatprep.subr.bf16.mxu0 0
    %159 = vmatpush1.bf16.msra.mxu0 0
    %160 = vmatprep.subr.bf16.mxu0 0
    %161 = vmatpush1.bf16.msra.mxu0 0
    %162 = vmatprep.subr.bf16.mxu0 0
    %163 = vmatpush1.bf16.msra.mxu0 0
    %164 = vmatprep.subr.bf16.mxu0 0
    %165 = vmatpush1.bf16.msra.mxu0 0
    %166 = vmatprep.mubr.bf16.mxu0 0
    %167 = vmatmul.mubr.bf16.gmra.mrb[0].mxu0 %v132
    %v168 = vpop.f32.mrb[0].mxu0
    %v169 = vadd.f32 %v116, %v168
    %v170 = vpop.f32.mrb[0].mxu0
    %v171 = vpop.f32.mrb[0].mxu0
    %v172 = vadd.f32 %v116, %v171
    %v173 = vpop.f32.mrb[0].mxu0
    %174 = vdwg.mxu0
    %v175 = vpack.c.bf16 %v172, %v169
    %v177 = vunpack.c.l.b16 %v175
    %v178 = vunpack.c.h.b16 %v175
    %v179 = vpack.c.b16 %v177, %v177
    %v180 = vpack.c.b16 %v178, %v178
    %vm183 = vcmask 781312
    %184 = vst.msk [vmem:[#allocation8] sm:$0xf] %vm183, %v179
    %185 = vst.msk [vmem:[#allocation8 + $0x4] sm:$0xf] %vm183, %v180
    // Predicated region
    $region34: #{tpu_custom_call.1} parent=1 // pred_check
      _
    $region35: #{tpu_custom_call.1} parent=1 // pred_check_branch
      %187 = sbr.rel (0) target = $region37
    $region36: #{tpu_custom_call.1} parent=1 // pred_region
      %s189 = ssub.s32 128, 128
      %190 = vsyncadd [#allocation5], %s189
      %s191 = sshll.u32 [#allocation8], 4
      %s192 = int_to_ptr.vmem [resolvable:$true] %s191
      %197 = dma.vmem_to_hbm [thread:$0]  %s192, 128, %s5, [#allocation5], 64, 64, 4
    $region37: #{tpu_custom_call.1} parent=1 // pred_fallthru
      _
    // Predicated region
    $region38: #{tpu_custom_call.1} parent=1 // pred_check
      _
    $region39: #{tpu_custom_call.1} parent=1 // pred_check_branch
      %199 = sbr.rel (0) target = $region41
    $region40: #{tpu_custom_call.1} parent=1 // pred_region
      %200 = dma.done [#allocation5], 128
    $region41: #{tpu_custom_call.1} parent=1 // pred_fallthru
      _
    %201 = vsyncpa [#allocation4], 1
    %202 = vsyncpa [#allocation7], 1
    %203 = vsyncpa [#allocation5], 1

</llo_original>
